<compile_context>
chip_gen: v5e
topology: v5e:2x2
jax: 0.10.0
libtpu: 0.0.40
codegen_flags: <defaults>
</compile_context>

<pallas_src>
import math

import jax
import jax.numpy as jnp
from jax.experimental import pallas as pl
from jax.experimental.pallas import tpu as pltpu

EPS = 1e-20
LANE = 128


def _concrete_dropout_kernel(params_ref, x_ref, u_ref, o_ref):
    # SMEM scalar parameters, hoisted out of the per-element hot path.
    log_p = params_ref[0]          # logit of the drop probability
    neg_inv_temp = params_ref[1]   # -1 / temperature
    inv_keep = params_ref[2]       # 1 / (1 - sigmoid(log_p))

    u = u_ref[...]

    # Fused logit noise: one log + one reciprocal instead of two logs.
    logit_noise = jnp.log((u + EPS) / (1.0 - u + EPS))

    # 1 - sigmoid(z) == sigmoid(-z): compute the keep-probability directly.
    keep = jax.nn.sigmoid((log_p + logit_noise) * neg_inv_temp)

    # Normalized retain mask in f32; multiply x in its own dtype (no upcast
    # of bf16 activations -- halves vreg/store bytes on v6e/v7x).
    mask = keep * inv_keep
    o_ref[...] = x_ref[...] * mask.astype(o_ref.dtype)


def _choose_layout(n_elements, max_tile_bytes=2 * 1024 * 1024, elem_bytes=4):
    """Pick (lane_width, padded_rows, tile_rows) for a lane-dense 2-D layout."""
    # Widest lane dimension (multiple of 128, capped at 2048) the input supports.
    lane_w = LANE
    for w in (2048, 1024, 512, 256):
        if n_elements >= w:
            lane_w = w
            break
    rows = pl.cdiv(n_elements, lane_w)

    # Row tile: multiple of 8 sized so one f32 tile is ~2 MiB (generation-safe:
    # x/u/out double-buffered ~= 12 MiB < 32 MiB scoped VMEM on all gens).
    tile_rows = max(8, min(rows, max_tile_bytes // (lane_w * elem_bytes)))
    tile_rows -= tile_rows % 8
    if rows < 8:
        tile_rows = rows  # full-extent block satisfies the (8,128) rule

    rows_padded = pl.cdiv(rows, tile_rows) * tile_rows
    return lane_w, rows_padded, tile_rows


def concrete_dropout(x, log_p, key, temperature=0.1):
    """ConcreteDropout forward. x: any shape/dtype; log_p: scalar; key: PRNG key."""
    orig_shape = x.shape
    n = x.size
    lane_w, rows_p, tile_rows = _choose_layout(n)
    total = rows_p * lane_w

    flat = x.reshape(-1)
    if total != n:
        flat = jnp.pad(flat, (0, total - n))
    x2 = flat.reshape(rows_p, lane_w)

    # Uniform noise (torch.rand_like equivalent), generated once host-side.
    u = jax.random.uniform(key, (rows_p, lane_w), dtype=jnp.float32)

    # Scalar prep hoisted out of the kernel (free: these are scalars).
    log_p_f = jnp.asarray(log_p, dtype=jnp.float32)
    scale = jax.nn.sigmoid(log_p_f)  # .detach() in torch; same forward value
    params = jnp.stack([
        log_p_f,
        jnp.float32(-1.0 / float(temperature)),
        1.0 / (1.0 - scale),
    ]).astype(jnp.float32)

    grid = (rows_p // tile_rows,)
    out = pl.pallas_call(
        _concrete_dropout_kernel,
        out_shape=jax.ShapeDtypeStruct((rows_p, lane_w), x.dtype),
        grid=grid,
        in_specs=[
            pl.BlockSpec(memory_space=pltpu.SMEM),                  # params
            pl.BlockSpec((tile_rows, lane_w), lambda i: (i, 0)),    # x
            pl.BlockSpec((tile_rows, lane_w), lambda i: (i, 0)),    # u
        ],
        out_specs=pl.BlockSpec((tile_rows, lane_w), lambda i: (i, 0)),
        compiler_params=pltpu.CompilerParams(
            dimension_semantics=("parallel",),
        ),
    )(params, x2, u)

    out = out.reshape(-1)
    if total != n:
        out = out[:n]
    return out.reshape(orig_shape)


if __name__ == "__main__":
    # Deterministic parameter init (matches nn.Module __init__ with init_p=0.1).
    init_p = 0.1
    log_p = math.log(init_p + EPS) - math.log(1.0 - init_p + EPS)

    key = jax.random.PRNGKey(0)
    kx, ku = jax.random.split(key)

    # Small NCHW input consistent with a conv-style activation.
    x = jax.random.normal(kx, (2, 4, 16, 16), dtype=jnp.float32)

    out = concrete_dropout(x, log_p, ku, temperature=0.1)
    out = jax.block_until_ready(out)

    assert out.shape == x.shape
    assert out.dtype == x.dtype
    assert bool(jnp.all(jnp.isfinite(out)))

    # Sanity: with temperature=0.1 the relaxed mask is nearly binary, so each
    # output element is ~0 or ~x / (1 - p).
    scale = 1.0 / (1.0 + math.exp(-log_p))
    ratio = out / (x / (1.0 - scale))
    near_binary = jnp.mean((ratio < 0.05) | (ratio > 0.95))
    assert float(near_binary) > 0.85

    print("KERNEL_OK")
</pallas_src>

<mosaic_0001>
module attributes {stable_mosaic.version = 11 : i64} {
  func.func @_concrete_dropout_kernel(%arg0: i32, %arg1: memref<3xf32, #tpu.memory_space<smem>>, %arg2: memref<1x2048xf32, #tpu.memory_space<vmem>>, %arg3: memref<1x2048xf32, #tpu.memory_space<vmem>>, %arg4: memref<1x2048xf32, #tpu.memory_space<vmem>>) attributes {dimension_semantics = [#tpu.dimension_semantics<parallel>], iteration_bounds = array<i64: 1>, scalar_prefetch = 0 : i64, scratch_operands = 0 : i64, tpu.core_type = #tpu.core_type<tc>, window_params = [{transform_indices = @transform_0, window_bounds = array<i64: 3>}, {transform_indices = @transform_1, window_bounds = array<i64: 1, 2048>}, {transform_indices = @transform_2, window_bounds = array<i64: 1, 2048>}, {transform_indices = @transform_3, window_bounds = array<i64: 1, 2048>}]} {
    %c0 = arith.constant 0 : index
    %0 = memref.load %arg1[%c0] : memref<3xf32, #tpu.memory_space<smem>>
    %c1 = arith.constant 1 : index
    %1 = memref.load %arg1[%c1] : memref<3xf32, #tpu.memory_space<smem>>
    %c2 = arith.constant 2 : index
    %2 = memref.load %arg1[%c2] : memref<3xf32, #tpu.memory_space<smem>>
    %c0_0 = arith.constant 0 : index
    %c0_1 = arith.constant 0 : index
    %3 = vector.load %arg3[%c0_0, %c0_1] : memref<1x2048xf32, #tpu.memory_space<vmem>>, vector<1x2048xf32>
    %cst = arith.constant 9.99999968E-21 : f32
    %4 = vector.broadcast %cst : f32 to vector<1x2048xf32>
    %5 = arith.addf %3, %4 : vector<1x2048xf32>
    %cst_2 = arith.constant 1.000000e+00 : f32
    %6 = vector.broadcast %cst_2 : f32 to vector<1x2048xf32>
    %7 = arith.subf %6, %3 : vector<1x2048xf32>
    %cst_3 = arith.constant 9.99999968E-21 : f32
    %8 = vector.broadcast %cst_3 : f32 to vector<1x2048xf32>
    %9 = arith.addf %7, %8 : vector<1x2048xf32>
    %10 = arith.divf %5, %9 : vector<1x2048xf32>
    %11 = math.log %10 : vector<1x2048xf32>
    %12 = vector.broadcast %0 : f32 to vector<1x2048xf32>
    %13 = arith.addf %12, %11 : vector<1x2048xf32>
    %14 = vector.broadcast %1 : f32 to vector<1x2048xf32>
    %15 = arith.mulf %13, %14 : vector<1x2048xf32>
    %16 = arith.negf %15 : vector<1x2048xf32>
    %17 = math.exp %16 : vector<1x2048xf32>
    %cst_4 = arith.constant 1.000000e+00 : f32
    %18 = vector.broadcast %cst_4 : f32 to vector<1x2048xf32>
    %19 = arith.addf %18, %17 : vector<1x2048xf32>
    %20 = arith.divf %18, %19 : vector<1x2048xf32>
    %21 = vector.broadcast %2 : f32 to vector<1x2048xf32>
    %22 = arith.mulf %20, %21 : vector<1x2048xf32>
    %c0_5 = arith.constant 0 : index
    %c0_6 = arith.constant 0 : index
    %23 = vector.load %arg2[%c0_5, %c0_6] : memref<1x2048xf32, #tpu.memory_space<vmem>>, vector<1x2048xf32>
    %24 = arith.mulf %23, %22 : vector<1x2048xf32>
    %c0_7 = arith.constant 0 : index
    %c0_8 = arith.constant 0 : index
    %25 = vector.load %arg4[%c0_7, %c0_8] : memref<1x2048xf32, #tpu.memory_space<vmem>>, vector<1x2048xf32>
    tpu.vector_store %arg4[%c0_7, %c0_8], %24 {strides = array<i32>} : memref<1x2048xf32, #tpu.memory_space<vmem>>, vector<1x2048xf32>,
    return
  }
  func.func @transform_0(%arg0: i32) -> i32 {
    %c0_i32 = arith.constant 0 : i32
    %c0_i32_0 = arith.constant 0 : i32
    return %c0_i32 : i32
  }
  func.func @transform_1(%arg0: i32) -> (i32, i32) {
    %c0_i32 = arith.constant 0 : i32
    %c0_i32_0 = arith.constant 0 : i32
    return %arg0, %c0_i32 : i32, i32
  }
  func.func @transform_2(%arg0: i32) -> (i32, i32) {
    %c0_i32 = arith.constant 0 : i32
    %c0_i32_0 = arith.constant 0 : i32
    return %arg0, %c0_i32 : i32, i32
  }
  func.func @transform_3(%arg0: i32) -> (i32, i32) {
    %c0_i32 = arith.constant 0 : i32
    %c0_i32_0 = arith.constant 0 : i32
    return %arg0, %c0_i32 : i32, i32
  }
}

</mosaic_0001>

<llo_original>
// kernel: tpu_custom_call.1
$region0: #{tpu_custom_call.1}
  #allocation0 [shape = 'u32[]', space=smem, size = 0x4, offset = 0x4, fixed_abs, tag = 'smem constant byte address 0x4 - core index']
  #allocation1 [shape = 'u32[72,128]{1,0:T(1,128)}', space=vmem, size = 0x9000, scoped, tag = 'internal scratch']
  %s0 = inlined_call_operand.hbm [shape: f32[3], index: 0, kind: input, shape index: {}]
  %s1 = inlined_call_operand.hbm [shape: f32[1,2048], index: 1, kind: input, shape index: {}]
  %s2 = inlined_call_operand.hbm [shape: f32[1,2048], index: 2, kind: input, shape index: {}]
  %s3 = inlined_call_operand.hbm [shape: f32[1,2048], index: 3, kind: output, shape index: {}]
  %s4 = sld [smem:[#allocation0]]
  $region34: #{tpu_custom_call.1} parent=0
    _
  %s6 = ssub.s32 1, %s4
  %s7 = scalar_select 0, %s6, %s4
  $region1: #{tpu_custom_call.1} parent=0
    #allocation2 [shape = 'u8[512]{0}', space=smem, size = 0x200, scoped, tag = 'input window, operand 0, single buffered']
    #allocation3 [shape = 's32[1]{0}', space=sflag, size = 0x4, scoped, tag = 'scoped memory for tpu_custom_call.1']
    #allocation4 [shape = 's32[1]{0}', space=sflag, size = 0x4, scoped, tag = 'scoped memory for tpu_custom_call.1']
    #allocation5 [shape = 's32[1]{0}', space=sflag, size = 0x4, scoped, tag = 'scoped memory for tpu_custom_call.1']
    #allocation6 [shape = 'u8[8192]{0}', space=vmem, size = 0x2000, scoped, tag = 'input window, operand 1, single buffered']
    #allocation7 [shape = 'u8[8192]{0}', space=vmem, size = 0x2000, scoped, tag = 'input window, operand 2, single buffered']
    #allocation8 [shape = 's32[1]{0}', space=sflag, size = 0x4, scoped, tag = 'scoped memory for tpu_custom_call.1']
    #allocation9 [shape = 'u8[8192]{0}', space=vmem, size = 0x2000, scoped, tag = 'output window, operand 0, single buffered']
    %8 = vsyncpa [#allocation5], 0
    %9 = vsyncpa [#allocation3], 0
    %10 = vsyncpa [#allocation8], 0
    %11 = vsyncpa [#allocation4], 0
    // Predicated region
    $region2: #{tpu_custom_call.1} parent=1 // pred_check
      _
    $region3: #{tpu_custom_call.1} parent=1 // pred_check_branch
      %13 = sbr.rel (0) target = $region5
    $region4: #{tpu_custom_call.1} parent=1 // pred_region
      %15 = vsyncadd [#allocation5], 0
      %s17 = sshll.u32 %s0, 4
      %s18 = int_to_ptr.hbm [resolvable:$true] %s17
      %20 = dma.hbm_to_smem %s18, 16, [#allocation2], [#allocation5]
    $region5: #{tpu_custom_call.1} parent=1 // pred_fallthru
      _
    // Predicated region
    $region6: #{tpu_custom_call.1} parent=1 // pred_check
      _
    $region7: #{tpu_custom_call.1} parent=1 // pred_check_branch
      %22 = sbr.rel (0) target = $region9
    $region8: #{tpu_custom_call.1} parent=1 // pred_region
      %24 = vsyncadd [#allocation3], 0
      %s26 = sshll.u32 %s1, 4
      %s27 = int_to_ptr.hbm [resolvable:$true] %s26
      %s28 = sshll.u32 [#allocation6], 4
      %s29 = int_to_ptr.vmem [resolvable:$true] %s28
      %31 = dma.hbm_to_vmem [thread:$0]  %s27, 256, %s29, [#allocation3]
    $region9: #{tpu_custom_call.1} parent=1 // pred_fallthru
      _
    // Predicated region
    $region10: #{tpu_custom_call.1} parent=1 // pred_check
      _
    $region11: #{tpu_custom_call.1} parent=1 // pred_check_branch
      %33 = sbr.rel (0) target = $region13
    $region12: #{tpu_custom_call.1} parent=1 // pred_region
      %35 = vsyncadd [#allocation8], 0
      %s37 = sshll.u32 %s2, 4
      %s38 = int_to_ptr.hbm [resolvable:$true] %s37
      %s39 = sshll.u32 [#allocation7], 4
      %s40 = int_to_ptr.vmem [resolvable:$true] %s39
      %42 = dma.hbm_to_vmem [thread:$0]  %s38, 256, %s40, [#allocation8]
    $region13: #{tpu_custom_call.1} parent=1 // pred_fallthru
      _
    // Predicated region
    $region14: #{tpu_custom_call.1} parent=1 // pred_check
      _
    $region15: #{tpu_custom_call.1} parent=1 // pred_check_branch
      %44 = sbr.rel (0) target = $region17
    $region16: #{tpu_custom_call.1} parent=1 // pred_region
      %46 = dma.done [#allocation5], 16
    $region17: #{tpu_custom_call.1} parent=1 // pred_fallthru
      _
    // Predicated region
    $region18: #{tpu_custom_call.1} parent=1 // pred_check
      _
    $region19: #{tpu_custom_call.1} parent=1 // pred_check_branch
      %48 = sbr.rel (0) target = $region21
    $region20: #{tpu_custom_call.1} parent=1 // pred_region
      %50 = dma.done [#allocation3], 256
    $region21: #{tpu_custom_call.1} parent=1 // pred_fallthru
      _
    // Predicated region
    $region22: #{tpu_custom_call.1} parent=1 // pred_check
      _
    $region23: #{tpu_custom_call.1} parent=1 // pred_check_branch
      %52 = sbr.rel (0) target = $region25
    $region24: #{tpu_custom_call.1} parent=1 // pred_region
      %54 = dma.done [#allocation8], 256
    $region25: #{tpu_custom_call.1} parent=1 // pred_fallthru
      _
    %55 = sfence
    %s56 = sld [smem:[#allocation2]]
    %s57 = sld [smem:[#allocation2 + $0x1]]
    %s58 = sld [smem:[#allocation2 + $0x2]]
    %v59 = vld [vmem:[#allocation7] sm:$0xff]
    %v60 = vld [vmem:[#allocation7 + $0x8] sm:$0xff]
    %v61 = vadd.f32 %v59, 1e-20
    %v62 = vadd.f32 %v60, 1e-20
    %v63 = vsub.f32 1.0, %v59
    %v64 = vsub.f32 1.0, %v60
    %v65 = vadd.f32 %v63, 1e-20
    %v66 = vadd.f32 %v64, 1e-20
    %v67 = vrcp.pop %v65
    %v68 = vmul.f32 %v65, %v67
    %v69 = vsub.f32 1.0, %v68
    %v70 = vmul.f32 %v67, %v69
    %v71 = vadd.f32 %v67, %v70
    %vm72 = vweird.f32 %v65
    %vm73 = vweird.f32 %v67
    %vm74 = vmor %vm72, %vm73
    %v75 = vsel %vm74, %v67, %v71
    %v76 = vand.u32 2147483647, %v65
    %vm77 = vcmp.eq.f32.partialorder %v76, 8.507059e+37
    %v78 = vand.u32 %v65, 2147483648
    %v79 = vor.u32 1.1754944e-38, %v78
    %v80 = vsel %vm77, %v79, %v75
    %v81 = vmul.f32 %v61, %v80
    %v82 = vrcp.pop %v66
    %v83 = vmul.f32 %v66, %v82
    %v84 = vsub.f32 1.0, %v83
    %v85 = vmul.f32 %v82, %v84
    %v86 = vadd.f32 %v82, %v85
    %vm87 = vweird.f32 %v66
    %vm88 = vweird.f32 %v82
    %vm89 = vmor %vm87, %vm88
    %v90 = vsel %vm89, %v82, %v86
    %v91 = vand.u32 2147483647, %v66
    %vm92 = vcmp.eq.f32.partialorder %v91, 8.507059e+37
    %v93 = vand.u32 %v66, 2147483648
    %v94 = vor.u32 1.1754944e-38, %v93
    %v95 = vsel %vm92, %v94, %v90
    %v96 = vmul.f32 %v62, %v95
    %v97 = vlog2.pop %v81
    %v98 = vmul.f32 %v97, 0.6931472
    %v99 = vlog2.pop %v96
    %v100 = vmul.f32 %v99, 0.6931472
    %v101 = vstv %s56
    %v102 = vadd.f32 %v101, %v98
    %v103 = vadd.f32 %v101, %v100
    %v104 = vstv %s57
    %v105 = vmul.f32 %v102, %v104
    %v106 = vmul.f32 %v103, %v104
    %v107 = vxor.u32 %v105, 2147483648
    %v108 = vxor.u32 %v106, 2147483648
    %v109 = vmul.f32 %v107, 1.442695
    %v110 = vpow.pop %v109
    %v111 = vmul.f32 %v108, 1.442695
    %v112 = vpow.pop %v111
    %v113 = vadd.f32 %v110, 1.0
    %v114 = vadd.f32 %v112, 1.0
    %v115 = vrcp.pop %v113
    %v116 = vmul.f32 %v113, %v115
    %v117 = vsub.f32 1.0, %v116
    %v118 = vmul.f32 %v115, %v117
    %v119 = vadd.f32 %v115, %v118
    %vm120 = vweird.f32 %v113
    %vm121 = vweird.f32 %v115
    %vm122 = vmor %vm120, %vm121
    %v123 = vsel %vm122, %v115, %v119
    %v124 = vand.u32 2147483647, %v113
    %vm125 = vcmp.eq.f32.partialorder %v124, 8.507059e+37
    %v126 = vand.u32 %v113, 2147483648
    %v127 = vor.u32 1.1754944e-38, %v126
    %v128 = vsel %vm125, %v127, %v123
    %v129 = vmul.f32 1.0, %v128
    %v130 = vrcp.pop %v114
    %v131 = vmul.f32 %v114, %v130
    %v132 = vsub.f32 1.0, %v131
    %v133 = vmul.f32 %v130, %v132
    %v134 = vadd.f32 %v130, %v133
    %vm135 = vweird.f32 %v114
    %vm136 = vweird.f32 %v130
    %vm137 = vmor %vm135, %vm136
    %v138 = vsel %vm137, %v130, %v134
    %v139 = vand.u32 2147483647, %v114
    %vm140 = vcmp.eq.f32.partialorder %v139, 8.507059e+37
    %v141 = vand.u32 %v114, 2147483648
    %v142 = vor.u32 1.1754944e-38, %v141
    %v143 = vsel %vm140, %v142, %v138
    %v144 = vmul.f32 1.0, %v143
    %v145 = vstv %s58
    %v146 = vmul.f32 %v129, %v145
    %v147 = vmul.f32 %v144, %v145
    %v148 = vld [vmem:[#allocation6] sm:$0xff]
    %v149 = vld [vmem:[#allocation6 + $0x8] sm:$0xff]
    %v150 = vmul.f32 %v148, %v146
    %v151 = vmul.f32 %v149, %v147
    %152 = vst [vmem:[#allocation9] sm:$0xff] %v150
    %153 = vst [vmem:[#allocation9 + $0x8] sm:$0xff] %v151
    // Predicated region
    $region26: #{tpu_custom_call.1} parent=1 // pred_check
      _
    $region27: #{tpu_custom_call.1} parent=1 // pred_check_branch
      %155 = sbr.rel (0) target = $region29
    $region28: #{tpu_custom_call.1} parent=1 // pred_region
      %157 = vsyncadd [#allocation4], 0
      %s159 = sshll.u32 [#allocation9], 4
      %s160 = int_to_ptr.vmem [resolvable:$true] %s159
      %s161 = sshll.u32 %s3, 4
      %s162 = int_to_ptr.hbm [resolvable:$true] %s161
      %164 = dma.vmem_to_hbm [thread:$0]  %s160, 256, %s162, [#allocation4]
    $region29: #{tpu_custom_call.1} parent=1 // pred_fallthru
      _
    // Predicated region
    $region30: #{tpu_custom_call.1} parent=1 // pred_check
      _
    $region31: #{tpu_custom_call.1} parent=1 // pred_check_branch
      %166 = sbr.rel (0) target = $region33
    $region32: #{tpu_custom_call.1} parent=1 // pred_region
      %168 = dma.done [#allocation4], 256
    $region33: #{tpu_custom_call.1} parent=1 // pred_fallthru
      _
    %169 = vsyncpa [#allocation3], 1
    %170 = vsyncpa [#allocation8], 1
    %171 = vsyncpa [#allocation4], 1
    %172 = vsyncpa [#allocation5], 1

</llo_original>
